<compile_context>
chip_gen: v5e
topology: v5e:2x2
jax: 0.10.0
libtpu: 0.0.40
codegen_flags: <defaults>
</compile_context>

<pallas_src>
import math
import functools

import jax
import jax.numpy as jnp
import numpy as np
from jax.experimental import pallas as pl
from jax.experimental.pallas import tpu as pltpu


def _layer_scale_kernel(x_ref, g_ref, o_ref):
    # x_ref: (tile_rows, D), g_ref: (1, D) -> broadcast multiply on the VPU.
    o_ref[...] = x_ref[...] * g_ref[...]


def layer_scale(x, gamma, *, row_tile=512):
    """x: (..., D), gamma: (D,).  Returns x * gamma (broadcast over leading dims)."""
    D = x.shape[-1]
    R = int(np.prod(x.shape[:-1])) if x.ndim > 1 else 1

    x2 = x.reshape(R, D)
    g2 = gamma.reshape(1, D).astype(x.dtype)

    if R <= row_tile:
        # Single block covering the whole (flattened) array: full-extent block
        # shapes are always legal, and one grid step minimizes overhead.
        tile = R
        r_pad = R
    else:
        tile = row_tile                       # multiple of 8 (sublane aligned)
        r_pad = pl.cdiv(R, tile) * tile
        if r_pad != R:
            x2 = jnp.pad(x2, ((0, r_pad - R), (0, 0)))

    grid = (r_pad // tile,)

    out = pl.pallas_call(
        _layer_scale_kernel,
        out_shape=jax.ShapeDtypeStruct((r_pad, D), x.dtype),
        grid=grid,
        in_specs=[
            pl.BlockSpec((tile, D), lambda i: (i, 0)),   # x rows tile
            pl.BlockSpec((1, D), lambda i: (0, 0)),      # gamma (constant block)
        ],
        out_specs=pl.BlockSpec((tile, D), lambda i: (i, 0)),
        compiler_params=pltpu.CompilerParams(
            dimension_semantics=("parallel",)),
    )(x2, g2)

    if r_pad != R:
        out = out[:R]
    return out.reshape(x.shape)


def reference(x, gamma):
    # Pure-JAX reference mirroring the PyTorch forward (inplace=False path).
    return x * gamma


if __name__ == "__main__":
    B, N, D = 2, 8, 128      # batch, seq, dim  (D = lane width for dense stores)

    key = jax.random.PRNGKey(0)
    kx, kg = jax.random.split(key, 2)

    x = jax.random.normal(kx, (B, N, D), dtype=jnp.float32)
    # gamma initialized like the module (init_values * ones) plus a random
    # perturbation so the broadcast axis is actually validated.
    gamma = 1e-5 * jnp.ones((D,), dtype=jnp.float32) \
        + 0.1 * jax.random.normal(kg, (D,), dtype=jnp.float32)

    out = layer_scale(x, gamma)
    out = jax.block_until_ready(out)

    ref = reference(x, gamma)
    np.testing.assert_allclose(np.asarray(out), np.asarray(ref),
                               rtol=1e-6, atol=1e-6)

    print("KERNEL_OK")
</pallas_src>

<mosaic_0001>
module attributes {stable_mosaic.version = 11 : i64} {
  func.func @_layer_scale_kernel(%arg0: i32, %arg1: memref<16x128xf32, #tpu.memory_space<vmem>>, %arg2: memref<1x128xf32, #tpu.memory_space<vmem>>, %arg3: memref<16x128xf32, #tpu.memory_space<vmem>>) attributes {dimension_semantics = [#tpu.dimension_semantics<parallel>], iteration_bounds = array<i64: 1>, scalar_prefetch = 0 : i64, scratch_operands = 0 : i64, tpu.core_type = #tpu.core_type<tc>, window_params = [{transform_indices = @transform_0, window_bounds = array<i64: 16, 128>}, {pipeline_mode = #tpu.pipeline_mode<synchronous>, transform_indices = @transform_1, window_bounds = array<i64: 1, 128>}, {transform_indices = @transform_2, window_bounds = array<i64: 16, 128>}]} {
    %c0 = arith.constant 0 : index
    %c0_0 = arith.constant 0 : index
    %0 = vector.load %arg1[%c0, %c0_0] : memref<16x128xf32, #tpu.memory_space<vmem>>, vector<16x128xf32>
    %c0_1 = arith.constant 0 : index
    %c0_2 = arith.constant 0 : index
    %1 = vector.load %arg2[%c0_1, %c0_2] : memref<1x128xf32, #tpu.memory_space<vmem>>, vector<1x128xf32>
    %2 = vector.broadcast %1 : vector<1x128xf32> to vector<16x128xf32>
    %3 = arith.mulf %0, %2 : vector<16x128xf32>
    %c0_3 = arith.constant 0 : index
    %c0_4 = arith.constant 0 : index
    %4 = vector.load %arg3[%c0_3, %c0_4] : memref<16x128xf32, #tpu.memory_space<vmem>>, vector<16x128xf32>
    tpu.vector_store %arg3[%c0_3, %c0_4], %3 {strides = array<i32>} : memref<16x128xf32, #tpu.memory_space<vmem>>, vector<16x128xf32>,
    return
  }
  func.func @transform_0(%arg0: i32) -> (i32, i32) {
    %c0_i32 = arith.constant 0 : i32
    %c0_i32_0 = arith.constant 0 : i32
    return %arg0, %c0_i32 : i32, i32
  }
  func.func @transform_1(%arg0: i32) -> (i32, i32) {
    %c0_i32 = arith.constant 0 : i32
    %c0_i32_0 = arith.constant 0 : i32
    %c0_i32_1 = arith.constant 0 : i32
    return %c0_i32, %c0_i32_0 : i32, i32
  }
  func.func @transform_2(%arg0: i32) -> (i32, i32) {
    %c0_i32 = arith.constant 0 : i32
    %c0_i32_0 = arith.constant 0 : i32
    return %arg0, %c0_i32 : i32, i32
  }
}

</mosaic_0001>

<llo_original>
// kernel: tpu_custom_call.1
$region0: #{tpu_custom_call.1}
  #allocation0 [shape = 'u32[]', space=smem, size = 0x4, offset = 0x4, fixed_abs, tag = 'smem constant byte address 0x4 - core index']
  #allocation1 [shape = 'u32[72,128]{1,0:T(1,128)}', space=vmem, size = 0x9000, scoped, tag = 'internal scratch']
  %s0 = inlined_call_operand.hbm [shape: f32[16,128], index: 0, kind: input, shape index: {}]
  %s1 = inlined_call_operand.hbm [shape: f32[1,128], index: 1, kind: input, shape index: {}]
  %s2 = inlined_call_operand.hbm [shape: f32[16,128], index: 2, kind: output, shape index: {}]
  %s3 = sld [smem:[#allocation0]]
  $region26: #{tpu_custom_call.1} parent=0
    _
  %s5 = ssub.s32 1, %s3
  %s6 = scalar_select 0, %s5, %s3
  $region1: #{tpu_custom_call.1} parent=0
    #allocation2 [shape = 'u8[8192]{0}', space=vmem, size = 0x2000, scoped, tag = 'input window, operand 0, single buffered']
    #allocation3 [shape = 's32[1]{0}', space=sflag, size = 0x4, scoped, tag = 'scoped memory for tpu_custom_call.1']
    #allocation4 [shape = 's32[1]{0}', space=sflag, size = 0x4, scoped, tag = 'scoped memory for tpu_custom_call.1']
    #allocation5 [shape = 'u8[512]{0}', space=vmem, size = 0x400, scoped, tag = 'input window, operand 1, single buffered']
    #allocation6 [shape = 's32[1]{0}', space=sflag, size = 0x4, scoped, tag = 'scoped memory for tpu_custom_call.1']
    #allocation7 [shape = 'u8[8192]{0}', space=vmem, size = 0x2000, scoped, tag = 'output window, operand 0, single buffered']
    %7 = vsyncpa [#allocation3], 0
    %8 = vsyncpa [#allocation6], 0
    %9 = vsyncpa [#allocation4], 0
    // Predicated region
    $region2: #{tpu_custom_call.1} parent=1 // pred_check
      _
    $region3: #{tpu_custom_call.1} parent=1 // pred_check_branch
      %11 = sbr.rel (0) target = $region5
    $region4: #{tpu_custom_call.1} parent=1 // pred_region
      %13 = vsyncadd [#allocation3], 0
      %s14 = sshll.u32 %s0, 4
      %s15 = int_to_ptr.hbm [resolvable:$true] %s14
      %s16 = sshll.u32 [#allocation2], 4
      %s17 = int_to_ptr.vmem [resolvable:$true] %s16
      %22 = dma.hbm_to_vmem [thread:$0]  %s15, 256, %s17, [#allocation3], 128, 128, 8
    $region5: #{tpu_custom_call.1} parent=1 // pred_fallthru
      _
    // Predicated region
    $region6: #{tpu_custom_call.1} parent=1 // pred_check
      _
    $region7: #{tpu_custom_call.1} parent=1 // pred_check_branch
      %24 = sbr.rel (0) target = $region9
    $region8: #{tpu_custom_call.1} parent=1 // pred_region
      %26 = vsyncadd [#allocation6], 0
      %s28 = sshll.u32 %s1, 4
      %s29 = int_to_ptr.hbm [resolvable:$true] %s28
      %s30 = sshll.u32 [#allocation5], 4
      %s31 = int_to_ptr.vmem [resolvable:$true] %s30
      %33 = dma.hbm_to_vmem [thread:$0]  %s29, 16, %s31, [#allocation6]
    $region9: #{tpu_custom_call.1} parent=1 // pred_fallthru
      _
    // Predicated region
    $region10: #{tpu_custom_call.1} parent=1 // pred_check
      _
    $region11: #{tpu_custom_call.1} parent=1 // pred_check_branch
      %35 = sbr.rel (0) target = $region13
    $region12: #{tpu_custom_call.1} parent=1 // pred_region
      %37 = dma.done [#allocation3], 256
    $region13: #{tpu_custom_call.1} parent=1 // pred_fallthru
      _
    // Predicated region
    $region14: #{tpu_custom_call.1} parent=1 // pred_check
      _
    $region15: #{tpu_custom_call.1} parent=1 // pred_check_branch
      %39 = sbr.rel (0) target = $region17
    $region16: #{tpu_custom_call.1} parent=1 // pred_region
      %41 = dma.done [#allocation6], 16
    $region17: #{tpu_custom_call.1} parent=1 // pred_fallthru
      _
    %v42 = vld [vmem:[#allocation2] sm:$0xff]
    %v43 = vld [vmem:[#allocation2 + $0x8] sm:$0xff]
    %v44 = vld [vmem:[#allocation5] sm:$0x1]
    %v46 = vperm.slane %v44, 0
    %v48 = vmul.f32 %v42, %v46
    %v49 = vmul.f32 %v43, %v46
    %50 = vst [vmem:[#allocation7] sm:$0xff] %v48
    %51 = vst [vmem:[#allocation7 + $0x8] sm:$0xff] %v49
    // Predicated region
    $region18: #{tpu_custom_call.1} parent=1 // pred_check
      _
    $region19: #{tpu_custom_call.1} parent=1 // pred_check_branch
      %53 = sbr.rel (0) target = $region21
    $region20: #{tpu_custom_call.1} parent=1 // pred_region
      %55 = vsyncadd [#allocation4], 0
      %s56 = sshll.u32 [#allocation7], 4
      %s57 = int_to_ptr.vmem [resolvable:$true] %s56
      %s58 = sshll.u32 %s2, 4
      %s59 = int_to_ptr.hbm [resolvable:$true] %s58
      %64 = dma.vmem_to_hbm [thread:$0]  %s57, 256, %s59, [#allocation4], 128, 128, 8
    $region21: #{tpu_custom_call.1} parent=1 // pred_fallthru
      _
    // Predicated region
    $region22: #{tpu_custom_call.1} parent=1 // pred_check
      _
    $region23: #{tpu_custom_call.1} parent=1 // pred_check_branch
      %66 = sbr.rel (0) target = $region25
    $region24: #{tpu_custom_call.1} parent=1 // pred_region
      %68 = dma.done [#allocation4], 256
    $region25: #{tpu_custom_call.1} parent=1 // pred_fallthru
      _
    %69 = vsyncpa [#allocation3], 1
    %70 = vsyncpa [#allocation6], 1
    %71 = vsyncpa [#allocation4], 1

</llo_original>
